<compile_context>
chip_gen: v7x
topology: tpu7x:2x2x1
jax: 0.10.0
libtpu: 0.0.40
codegen_flags: <defaults>
</compile_context>

<pallas_src>
import jax
import jax.numpy as jnp
from jax.experimental import pallas as pl
from jax.experimental.pallas import tpu as pltpu


def gcn_kernel(x_ref, blk_ref, xn_ref, wt_ref, bias_ref, o_ref, m_ref):
    b = pl.program_id(1)

    @pl.when(b == 0)
    def _():
        # Nodes 0..N-1 (batch 0 rows) aggregate neighbours + self loop:
        #   M = blk_rows @ X[0]   (f32 MXU, f32 accumulate)
        m_ref[...] = jnp.dot(blk_ref[...], xn_ref[...],
                             preferred_element_type=jnp.float32)

    @pl.when(b != 0)
    def _():
        # Batches >= 1 only carry the weight-1 self loop (degree 1): M = X.
        m_ref[...] = x_ref[...]

    # Linear projection + bias: Y = M @ W^T + b  (full F_out as lane dim).
    o_ref[...] = jnp.dot(m_ref[...], wt_ref[...],
                         preferred_element_type=jnp.float32) + bias_ref[...]


def _normalized_adjacency_block(adj, batch_size):
    """Non-zero (N, N) block of the GCN-normalized adjacency with the weight-1
    self loop folded into its diagonal (matches gcn_norm on the B-fold
    repeated edge_index of the PyTorch module)."""
    N = adj.shape[0]
    mask = (adj != 0).astype(jnp.float32)
    # add_remaining_self_loops drops original self loops before re-adding one
    # weight-1 self loop per node, so only off-diagonal edges keep weight B.
    mask_nd = mask * (1.0 - jnp.eye(N, dtype=jnp.float32))
    deg = batch_size * jnp.sum(mask_nd, axis=0) + 1.0   # in-degree + self loop
    dinv = deg ** -0.5
    # blk[t, s] = B * mask[s, t] * dinv[s] * dinv[t]   (t = target, s = source)
    blk = batch_size * mask_nd.T * dinv[:, None] * dinv[None, :]
    return blk + jnp.diag(dinv * dinv)


def _pick_node_tile(n, f_in, f_out):
    def fits(t):
        # Double-buffered f32 blk / x / out tiles must stay well under every
        # chip's default scoped VMEM (v5e 16 MiB, v6e/v7x 32 MiB).
        return 2 * 4 * t * (n + f_in + f_out) <= 8 * 1024 * 1024

    if n <= 1024 and fits(n):
        return n
    for t in (1024, 512, 256, 128, 64, 32, 16, 8):
        if n % t == 0 and fits(t):
            return t
    # TODO(synk): zero-pad the node axis for pathological N with no 8-aligned
    # divisor instead of falling back to a single whole-array block.
    return n


@jax.jit
def gcn_forward(data, adj, weight, bias):
    """data: (B, N, F_in); adj: (N, N); weight: (F_out, F_in); bias: (F_out,)."""
    B, N, F_in = data.shape
    F_out = weight.shape[0]

    x = data.astype(jnp.float32)                        # (B, N, F_in)
    blk = _normalized_adjacency_block(adj, B)           # (N, N) f32
    xn = x[0]                                           # (N, F_in): nodes 0..N-1
    wt = weight.T.astype(jnp.float32)                   # (F_in, F_out)
    b2 = bias.reshape(1, F_out).astype(jnp.float32)     # (1, F_out)

    tn = _pick_node_tile(N, F_in, F_out)
    # v7x shards parallel grid axes over its 2 TensorCores: make sure the grid
    # has at least 2 steps when the batch alone does not provide them.
    if B * (N // tn) < 2 and tn % 2 == 0 and N % (tn // 2) == 0:
        tn //= 2
    grid = (N // tn, B)                                 # batch varies fastest

    cost = pl.CostEstimate(
        flops=2 * N * N * F_in + 2 * B * N * F_in * F_out,
        transcendentals=0,
        bytes_accessed=4 * (B * N * F_in + N * N + N * F_in
                            + F_in * F_out + F_out + B * N * F_out),
    )

    # TODO(synk): for very large F_in * F_out, single-buffer the resident
    # wt / xn / bias blocks (pipeline_mode=pl.Buffered(1)) and/or add an
    # F_out / K grid axis so per-step VMEM stays bounded on v7x (64 MiB).
    out = pl.pallas_call(
        gcn_kernel,
        out_shape=jax.ShapeDtypeStruct((B, N, F_out), jnp.float32),
        grid=grid,
        in_specs=[
            pl.BlockSpec((None, tn, F_in), lambda j, b: (b, j, 0)),   # X tile
            pl.BlockSpec((tn, N), lambda j, b: (j, 0)),               # blk rows
            pl.BlockSpec((N, F_in), lambda j, b: (0, 0)),             # X[0] resident
            pl.BlockSpec((F_in, F_out), lambda j, b: (0, 0)),         # W^T resident
            pl.BlockSpec((1, F_out), lambda j, b: (0, 0)),            # bias resident
        ],
        out_specs=pl.BlockSpec((None, tn, F_out), lambda j, b: (b, j, 0)),
        scratch_shapes=[pltpu.VMEM((tn, F_in), jnp.float32)],
        compiler_params=pltpu.CompilerParams(
            dimension_semantics=("parallel", "parallel")),
        cost_estimate=cost,
    )(x, blk, xn, wt, b2)

    return out


def _reference(data, adj, weight, bias):
    """Pure-JAX dense reference with identical semantics (f32)."""
    B, N, F_in = data.shape
    BN = B * N
    x = data.reshape(BN, F_in).astype(jnp.float32)
    mask = (adj != 0).astype(jnp.float32)
    mask_nd = mask * (1.0 - jnp.eye(N, dtype=jnp.float32))
    deg = B * jnp.sum(mask_nd, axis=0) + 1.0
    dinv = jnp.concatenate([deg ** -0.5, jnp.ones((BN - N,), jnp.float32)])
    a = jnp.zeros((BN, BN), jnp.float32).at[:N, :N].set(
        B * mask_nd.T * dinv[:N, None] * dinv[None, :N])
    a = a + jnp.diag(dinv * dinv)
    y = (a @ x) @ weight.T.astype(jnp.float32) + bias.astype(jnp.float32)
    return y.reshape(B, N, -1)


if __name__ == "__main__":
    key = jax.random.PRNGKey(0)
    k_data, k_adj, k_w, k_b = jax.random.split(key, 4)

    B, N, F_in, F_out = 2, 16, 8, 32

    data = jax.random.normal(k_data, (B, N, F_in), dtype=jnp.float32)
    # Sparse-ish adjacency; GCNConv normalizes and (re)adds self loops itself.
    adj = (jax.random.uniform(k_adj, (N, N)) < 0.25).astype(jnp.float32)
    weight = jax.random.normal(k_w, (F_out, F_in), dtype=jnp.float32) * jnp.sqrt(
        2.0 / (F_in + F_out))
    bias = jax.random.normal(k_b, (F_out,), dtype=jnp.float32) * 0.01

    out = gcn_forward(data, adj, weight, bias)
    jax.block_until_ready(out)
    assert out.shape == (B, N, F_out)

    ref = _reference(data, adj, weight, bias)
    err = float(jnp.max(jnp.abs(out - ref)))
    assert jnp.allclose(out, ref, rtol=1e-2, atol=1e-2), err

    print("KERNEL_OK")
</pallas_src>

<mosaic_0001>
module attributes {stable_mosaic.version = 11 : i64} {
  func.func @gcn_kernel(%arg0: i32, %arg1: i32, %arg2: memref<1x16x8xf32, #tpu.memory_space<vmem>>, %arg3: memref<16x16xf32, #tpu.memory_space<vmem>>, %arg4: memref<16x8xf32, #tpu.memory_space<vmem>>, %arg5: memref<8x32xf32, #tpu.memory_space<vmem>>, %arg6: memref<1x32xf32, #tpu.memory_space<vmem>>, %arg7: memref<1x16x32xf32, #tpu.memory_space<vmem>>, %arg8: memref<16x8xf32, #tpu.memory_space<vmem>>) attributes {dimension_semantics = [#tpu.dimension_semantics<parallel>, #tpu.dimension_semantics<parallel>], iteration_bounds = array<i64: 1, 2>, scalar_prefetch = 0 : i64, scratch_operands = 1 : i64, tpu.core_type = #tpu.core_type<tc>, window_params = [{transform_indices = @transform_0, window_bounds = array<i64: 1, 16, 8>}, {transform_indices = @transform_1, window_bounds = array<i64: 16, 16>}, {pipeline_mode = #tpu.pipeline_mode<synchronous>, transform_indices = @transform_2, window_bounds = array<i64: 16, 8>}, {pipeline_mode = #tpu.pipeline_mode<synchronous>, transform_indices = @transform_3, window_bounds = array<i64: 8, 32>}, {pipeline_mode = #tpu.pipeline_mode<synchronous>, transform_indices = @transform_4, window_bounds = array<i64: 1, 32>}, {transform_indices = @transform_5, window_bounds = array<i64: 1, 16, 32>}]} {
    %c0_i32 = arith.constant 0 : i32
    %0 = arith.cmpi eq, %arg1, %c0_i32 : i32
    %1 = arith.extui %0 : i1 to i32
    %c0_i32_0 = arith.constant 0 : i32
    %2 = arith.cmpi ne, %1, %c0_i32_0 : i32
    scf.if %2 {
      %c0_11 = arith.constant 0 : index
      %c0_12 = arith.constant 0 : index
      %15 = vector.load %arg3[%c0_11, %c0_12] : memref<16x16xf32, #tpu.memory_space<vmem>>, vector<16x16xf32>
      %c0_13 = arith.constant 0 : index
      %c0_14 = arith.constant 0 : index
      %16 = vector.load %arg4[%c0_13, %c0_14] : memref<16x8xf32, #tpu.memory_space<vmem>>, vector<16x8xf32>
      %cst_15 = arith.constant dense<0.000000e+00> : vector<16x8xf32>
      %17 = tpu.matmul %15, %16, %cst_15 {dimension_numbers = #tpu.dot_dimension_numbers<[1], [0], [0], [1], [0, 0, 1, 1], [], []>} : vector<16x16xf32>, vector<16x8xf32>, vector<16x8xf32> -> vector<16x8xf32>
      %c0_16 = arith.constant 0 : index
      %c0_17 = arith.constant 0 : index
      %18 = vector.load %arg8[%c0_16, %c0_17] : memref<16x8xf32, #tpu.memory_space<vmem>>, vector<16x8xf32>
      tpu.vector_store %arg8[%c0_16, %c0_17], %17 {strides = array<i32>} : memref<16x8xf32, #tpu.memory_space<vmem>>, vector<16x8xf32>,
    } else {
    }
    %c0_i32_1 = arith.constant 0 : i32
    %3 = arith.cmpi ne, %arg1, %c0_i32_1 : i32
    %4 = arith.extui %3 : i1 to i32
    %c0_i32_2 = arith.constant 0 : i32
    %5 = arith.cmpi ne, %4, %c0_i32_2 : i32
    scf.if %5 {
      %c0_11 = arith.constant 0 : index
      %c0_12 = arith.constant 0 : index
      %c0_13 = arith.constant 0 : index
      %15 = vector.load %arg2[%c0_11, %c0_12, %c0_13] : memref<1x16x8xf32, #tpu.memory_space<vmem>>, vector<1x16x8xf32>
      %16 = vector.shape_cast %15 : vector<1x16x8xf32> to vector<16x8xf32>
      %c0_14 = arith.constant 0 : index
      %c0_15 = arith.constant 0 : index
      %17 = vector.load %arg8[%c0_14, %c0_15] : memref<16x8xf32, #tpu.memory_space<vmem>>, vector<16x8xf32>
      tpu.vector_store %arg8[%c0_14, %c0_15], %16 {strides = array<i32>} : memref<16x8xf32, #tpu.memory_space<vmem>>, vector<16x8xf32>,
    } else {
    }
    %c0 = arith.constant 0 : index
    %c0_3 = arith.constant 0 : index
    %6 = vector.load %arg8[%c0, %c0_3] : memref<16x8xf32, #tpu.memory_space<vmem>>, vector<16x8xf32>
    %c0_4 = arith.constant 0 : index
    %c0_5 = arith.constant 0 : index
    %7 = vector.load %arg5[%c0_4, %c0_5] : memref<8x32xf32, #tpu.memory_space<vmem>>, vector<8x32xf32>
    %cst = arith.constant dense<0.000000e+00> : vector<16x32xf32>
    %8 = tpu.matmul %6, %7, %cst {dimension_numbers = #tpu.dot_dimension_numbers<[1], [0], [0], [1], [0, 0, 1, 1], [], []>} : vector<16x8xf32>, vector<8x32xf32>, vector<16x32xf32> -> vector<16x32xf32>
    %c0_6 = arith.constant 0 : index
    %c0_7 = arith.constant 0 : index
    %9 = vector.load %arg6[%c0_6, %c0_7] : memref<1x32xf32, #tpu.memory_space<vmem>>, vector<1x32xf32>
    %10 = vector.broadcast %9 : vector<1x32xf32> to vector<16x32xf32>
    %11 = arith.addf %8, %10 : vector<16x32xf32>
    %c0_8 = arith.constant 0 : index
    %c0_9 = arith.constant 0 : index
    %c0_10 = arith.constant 0 : index
    %12 = vector.load %arg7[%c0_8, %c0_9, %c0_10] : memref<1x16x32xf32, #tpu.memory_space<vmem>>, vector<1x16x32xf32>
    %13 = vector.shape_cast %12 : vector<1x16x32xf32> to vector<16x32xf32>
    %14 = vector.shape_cast %11 : vector<16x32xf32> to vector<1x16x32xf32>
    tpu.vector_store %arg7[%c0_8, %c0_9, %c0_10], %14 {strides = array<i32>} : memref<1x16x32xf32, #tpu.memory_space<vmem>>, vector<1x16x32xf32>,
    return
  }
  func.func @transform_0(%arg0: i32, %arg1: i32) -> (i32, i32, i32) {
    %c0_i32 = arith.constant 0 : i32
    %c0_i32_0 = arith.constant 0 : i32
    return %arg1, %arg0, %c0_i32 : i32, i32, i32
  }
  func.func @transform_1(%arg0: i32, %arg1: i32) -> (i32, i32) {
    %c0_i32 = arith.constant 0 : i32
    %c0_i32_0 = arith.constant 0 : i32
    return %arg0, %c0_i32 : i32, i32
  }
  func.func @transform_2(%arg0: i32, %arg1: i32) -> (i32, i32) {
    %c0_i32 = arith.constant 0 : i32
    %c0_i32_0 = arith.constant 0 : i32
    %c0_i32_1 = arith.constant 0 : i32
    return %c0_i32, %c0_i32_0 : i32, i32
  }
  func.func @transform_3(%arg0: i32, %arg1: i32) -> (i32, i32) {
    %c0_i32 = arith.constant 0 : i32
    %c0_i32_0 = arith.constant 0 : i32
    %c0_i32_1 = arith.constant 0 : i32
    return %c0_i32, %c0_i32_0 : i32, i32
  }
  func.func @transform_4(%arg0: i32, %arg1: i32) -> (i32, i32) {
    %c0_i32 = arith.constant 0 : i32
    %c0_i32_0 = arith.constant 0 : i32
    %c0_i32_1 = arith.constant 0 : i32
    return %c0_i32, %c0_i32_0 : i32, i32
  }
  func.func @transform_5(%arg0: i32, %arg1: i32) -> (i32, i32, i32) {
    %c0_i32 = arith.constant 0 : i32
    %c0_i32_0 = arith.constant 0 : i32
    return %arg1, %arg0, %c0_i32 : i32, i32, i32
  }
}

</mosaic_0001>

<llo_original>
// kernel: gcn_forward.1
$region0: #{gcn_forward.1}
  #allocation0 [shape = 'u32[]', space=smem, size = 0x4, offset = 0x4, fixed_abs, tag = 'smem constant byte address 0x4 - core index']
  #allocation1 [shape = 'u32[144,128]{1,0:T(1,128)}', space=vmem, size = 0x12000, scoped, tag = 'internal scratch']
  #allocation2 [shape = 'f32[16,8]{1,0:T(8,128)}', space=vmem, size = 0x2000, scoped, tag = 'scratch operand']
  %s0 = inlined_call_operand.vmem [shape: f32[2,16,8], index: 0, kind: input, shape index: {}]
  %s1 = inlined_call_operand.vmem [shape: f32[16,16], index: 1, kind: input, shape index: {}]
  %s2 = inlined_call_operand.vmem [shape: f32[16,8], index: 2, kind: input, shape index: {}]
  %s3 = inlined_call_operand.vmem [shape: f32[8,32], index: 3, kind: input, shape index: {}]
  %s4 = inlined_call_operand.vmem [shape: f32[1,32], index: 4, kind: input, shape index: {}]
  %s5 = inlined_call_operand.hbm [shape: f32[2,16,32], index: 5, kind: output, shape index: {}]
  %s6 = sld [smem:[#allocation0]]
  $region61: #{gcn_forward.1} parent=0
    _
  %s8 = ssub.s32 1, %s6
  %s9 = scalar_select 0, %s8, %s6
  $region1: #{gcn_forward.1} parent=0
    #allocation3 [shape = 'u8[16384]{0}', space=vmem, size = 0x4000, scoped, tag = 'output window, operand 0']
    #allocation4 [shape = 's32[2]{0}', space=sflag, size = 0x8, scoped, tag = 'scoped memory for gcn_forward.1']
    %10 = vsyncpa [#allocation4], 0
    %s11 = scalar_lea.sflag [#allocation4], 1
    %12 = vsyncpa %s11, 0
    loop: start=0, step=1, limit=4
    $region2: #{gcn_forward.1} parent=1 // loop_pre_header
      _
    $region3: #{gcn_forward.1} parent=1 // loop_header
      %s14 = sphi 0, %s18
      %p15 = scmp.ge.s32.totalorder %s14, 4
      %s21 = sphi 0, %s33
      %s22 = sphi 0, %s29
      %s23 = sphi 0, %s21
      %s24 = sphi 0, %s22
      %s25 = sphi 0, %s23
      %s26 = sphi 0, %s24
      %s38 = sphi 0, %s40
      %s41 = sphi 0, %s38
      %s42 = sphi 0, %s41
      %s58 = sphi 0, %s42
      %s64 = sphi 0, %s66
      %s67 = sphi 0, %s64
      %s68 = sphi 0, %s67
      %s84 = sphi 0, %s68
      %s88 = sphi 0, %s88
      %s90 = sphi 0, %s88
      %s91 = sphi 0, %s90
      %s105 = sphi 0, %s91
      %s109 = sphi 0, %s109
      %s111 = sphi 0, %s109
      %s112 = sphi 0, %s111
      %s126 = sphi 0, %s112
      %s130 = sphi 0, %s130
      %s132 = sphi 0, %s130
      %s133 = sphi 0, %s132
      %s147 = sphi 0, %s133
      %s155 = sphi 0, %s157
      %s158 = sphi 0, %s155
      %s159 = sphi 0, %s158
      %s175 = sphi 0, %s159
    $region4: #{gcn_forward.1} parent=1 // loop_header_branch
      %17 = sbr.rel (%p15) target = $region8
    $region5: #{gcn_forward.1} parent=1 // loop_body
      %s19 = ssub.s32 %s14, 1
      %s20 = ssub.s32 %s14, 2
      %s27 = sadd.s32 1, %s22
      %p28 = scmp.ge.s32.totalorder %s27, 2
      %s29 = scalar_select %p28, 0, %s27
      %s30 = sadd.s32 1, %s21
      %s31 = scalar_select %p28, %s30, %s21
      %p32 = scmp.ge.s32.totalorder %s31, 1
      %s33 = scalar_select %p32, 0, %s31
      %s34 = ssub.s32 %s22, %s29
      %s35 = ssub.s32 %s21, %s33
      %s36 = sor.u32 %s34, %s35
      %p37 = scmp.eq.s32.totalorder %s36, 0
      %s39 = sadd.s32 %s38, 1
      %s40 = scalar_select %p37, %s38, %s39
      %p43 = pneg %p37
      %p44 = scmp.eq.s32.totalorder %s14, 1
      %p45 = por %p43, %p44
      %p46 = scmp.ne.s32.totalorder %s38, %s41
      %p47 = scmp.eq.s32.totalorder %s14, 0
      %p48 = por %p46, %p47
      %p49 = scmp.ne.s32.totalorder %s38, %s41
      %p50 = scmp.eq.s32.totalorder %s19, 1
      %p51 = por %p49, %p50
      %p52 = scmp.ne.s32.totalorder %s41, %s42
      %p53 = scmp.eq.s32.totalorder %s19, 0
      %p54 = por %p52, %p53
      %p55 = scmp.ne.s32.totalorder %s41, %s42
      %p56 = scmp.eq.s32.totalorder %s20, 1
      %p57 = por %p55, %p56
      %p59 = scmp.ne.s32.totalorder %s42, %s58
      %p60 = scmp.eq.s32.totalorder %s20, 0
      %p61 = por %p59, %p60
      %s62 = ssub.s32 %s21, %s33
      %p63 = scmp.eq.s32.totalorder %s62, 0
      %s65 = sadd.s32 %s64, 1
      %s66 = scalar_select %p63, %s64, %s65
      %p69 = pneg %p63
      %p70 = scmp.eq.s32.totalorder %s14, 1
      %p71 = por %p69, %p70
      %p72 = scmp.ne.s32.totalorder %s64, %s67
      %p73 = scmp.eq.s32.totalorder %s14, 0
      %p74 = por %p72, %p73
      %p75 = scmp.ne.s32.totalorder %s64, %s67
      %p76 = scmp.eq.s32.totalorder %s19, 1
      %p77 = por %p75, %p76
      %p78 = scmp.ne.s32.totalorder %s67, %s68
      %p79 = scmp.eq.s32.totalorder %s19, 0
      %p80 = por %p78, %p79
      %p81 = scmp.ne.s32.totalorder %s67, %s68
      %p82 = scmp.eq.s32.totalorder %s20, 1
      %p83 = por %p81, %p82
      %p85 = scmp.ne.s32.totalorder %s68, %s84
      %p86 = scmp.eq.s32.totalorder %s20, 0
      %p87 = por %p85, %p86
      %s89 = sadd.s32 %s88, 1
      %p92 = scmp.eq.s32.totalorder %s14, 1
      %p93 = scmp.ne.s32.totalorder %s88, %s90
      %p94 = scmp.eq.s32.totalorder %s14, 0
      %p95 = por %p93, %p94
      %p96 = scmp.ne.s32.totalorder %s88, %s90
      %p97 = scmp.eq.s32.totalorder %s19, 1
      %p98 = por %p96, %p97
      %p99 = scmp.ne.s32.totalorder %s90, %s91
      %p100 = scmp.eq.s32.totalorder %s19, 0
      %p101 = por %p99, %p100
      %p102 = scmp.ne.s32.totalorder %s90, %s91
      %p103 = scmp.eq.s32.totalorder %s20, 1
      %p104 = por %p102, %p103
      %p106 = scmp.ne.s32.totalorder %s91, %s105
      %p107 = scmp.eq.s32.totalorder %s20, 0
      %p108 = por %p106, %p107
      %s110 = sadd.s32 %s109, 1
      %p113 = scmp.eq.s32.totalorder %s14, 1
      %p114 = scmp.ne.s32.totalorder %s109, %s111
      %p115 = scmp.eq.s32.totalorder %s14, 0
      %p116 = por %p114, %p115
      %p117 = scmp.ne.s32.totalorder %s109, %s111
      %p118 = scmp.eq.s32.totalorder %s19, 1
      %p119 = por %p117, %p118
      %p120 = scmp.ne.s32.totalorder %s111, %s112
      %p121 = scmp.eq.s32.totalorder %s19, 0
      %p122 = por %p120, %p121
      %p123 = scmp.ne.s32.totalorder %s111, %s112
      %p124 = scmp.eq.s32.totalorder %s20, 1
      %p125 = por %p123, %p124
      %p127 = scmp.ne.s32.totalorder %s112, %s126
      %p128 = scmp.eq.s32.totalorder %s20, 0
      %p129 = por %p127, %p128
      %s131 = sadd.s32 %s130, 1
      %p134 = scmp.eq.s32.totalorder %s14, 1
      %p135 = scmp.ne.s32.totalorder %s130, %s132
      %p136 = scmp.eq.s32.totalorder %s14, 0
      %p137 = por %p135, %p136
      %p138 = scmp.ne.s32.totalorder %s130, %s132
      %p139 = scmp.eq.s32.totalorder %s19, 1
      %p140 = por %p138, %p139
      %p141 = scmp.ne.s32.totalorder %s132, %s133
      %p142 = scmp.eq.s32.totalorder %s19, 0
      %p143 = por %p141, %p142
      %p144 = scmp.ne.s32.totalorder %s132, %s133
      %p145 = scmp.eq.s32.totalorder %s20, 1
      %p146 = por %p144, %p145
      %p148 = scmp.ne.s32.totalorder %s133, %s147
      %p149 = scmp.eq.s32.totalorder %s20, 0
      %p150 = por %p148, %p149
      %s151 = ssub.s32 %s22, %s29
      %s152 = ssub.s32 %s21, %s33
      %s153 = sor.u32 %s151, %s152
      %p154 = scmp.eq.s32.totalorder %s153, 0
      %s156 = sadd.s32 %s155, 1
      %s157 = scalar_select %p154, %s155, %s156
      %p160 = pneg %p154
      %p161 = scmp.eq.s32.totalorder %s14, 1
      %p162 = por %p160, %p161
      %p163 = scmp.ne.s32.totalorder %s155, %s158
      %p164 = scmp.eq.s32.totalorder %s14, 0
      %p165 = por %p163, %p164
      %p166 = scmp.ne.s32.totalorder %s155, %s158
      %p167 = scmp.eq.s32.totalorder %s19, 1
      %p168 = por %p166, %p167
      %p169 = scmp.ne.s32.totalorder %s158, %s159
      %p170 = scmp.eq.s32.totalorder %s19, 0
      %p171 = por %p169, %p170
      %p172 = scmp.ne.s32.totalorder %s158, %s159
      %p173 = scmp.eq.s32.totalorder %s20, 1
      %p174 = por %p172, %p173
      %p176 = scmp.ne.s32.totalorder %s159, %s175
      %p177 = scmp.eq.s32.totalorder %s20, 0
      %p178 = por %p176, %p177
      %p179 = scmp.le.s32.totalorder 1, %s14
      %p180 = scmp.lt.s32.totalorder %s14, 3
      %p181 = pnand %p179, %p180
      %p182 = pneg %p181
      // Predicated region
      $region9: #{gcn_forward.1} parent=5 // pred_check
        _
      $region10: #{gcn_forward.1} parent=5 // pred_check_branch
        %184 = sbr.rel (%p181) target = $region12
      $region11: #{gcn_forward.1} parent=5 // pred_region
        %s185 = ssub.s32 %s14, 1
        // Predicated region
        $region13: #{gcn_forward.1} parent=11 // pred_check
          %p186 = pneg %p80
        $region14: #{gcn_forward.1} parent=11 // pred_check_branch
          %188 = sbr.rel (%p186) target = $region16
        $region15: #{gcn_forward.1} parent=11 // pred_region
          %s189 = smul.u32 2, %s23
          %p190 = scmp.lt.s32.totalorder %s189, 1
          %s191 = scalar_select %p190, %s189, 1
          %s192 = smul.addr %s191, 8
          %s193 = scalar_lea.vmem %s1, %s192
          %s194 = smul.u32 2, %s23
        $region16: #{gcn_forward.1} parent=11 // pred_fallthru
          _
        // Predicated region
        $region17: #{gcn_forward.1} parent=11 // pred_check
          %p195 = pneg %p101
        $region18: #{gcn_forward.1} parent=11 // pred_check_branch
          %197 = sbr.rel (%p195) target = $region20
        $region19: #{gcn_forward.1} parent=11 // pred_region
          _
        $region20: #{gcn_forward.1} parent=11 // pred_fallthru
          _
        // Predicated region
        $region21: #{gcn_forward.1} parent=11 // pred_check
          %p198 = pneg %p122
        $region22: #{gcn_forward.1} parent=11 // pred_check_branch
          %200 = sbr.rel (%p198) target = $region24
        $region23: #{gcn_forward.1} parent=11 // pred_region
          _
        $region24: #{gcn_forward.1} parent=11 // pred_fallthru
          _
        // Predicated region
        $region25: #{gcn_forward.1} parent=11 // pred_check
          %p201 = pneg %p143
        $region26: #{gcn_forward.1} parent=11 // pred_check_branch
          %203 = sbr.rel (%p201) target = $region28
        $region27: #{gcn_forward.1} parent=11 // pred_region
          _
        $region28: #{gcn_forward.1} parent=11 // pred_fallthru
          _
      $region12: #{gcn_forward.1} parent=5 // pred_fallthru
        _
      %p204 = scmp.lt.s32.totalorder %s14, 2
      // Predicated region
      $region29: #{gcn_forward.1} parent=5 // pred_check
        %p205 = pneg %p204
      $region30: #{gcn_forward.1} parent=5 // pred_check_branch
        %207 = sbr.rel (%p205) target = $region32
      $region31: #{gcn_forward.1} parent=5 // pred_region
        // Predicated region
        $region33: #{gcn_forward.1} parent=31 // pred_check
          %p208 = pneg %p48
        $region34: #{gcn_forward.1} parent=31 // pred_check_branch
          %210 = sbr.rel (%p208) target = $region36
        $region35: #{gcn_forward.1} parent=31 // pred_region
          %s211 = smul.u32 2, %s21
          %p212 = scmp.lt.s32.totalorder %s22, 1
          %s213 = scalar_select %p212, %s22, 1
          %p214 = scmp.lt.s32.totalorder %s211, 1
          %s215 = scalar_select %p214, %s211, 1
          %s216 = smul.addr %s213, 2
          %s217 = sadd.s32 %s215, %s216
          %s218 = smul.addr %s217, 8
          %s219 = scalar_lea.vmem %s0, %s218
          %s220 = smul.u32 2, %s21
        $region36: #{gcn_forward.1} parent=31 // pred_fallthru
          _
      $region32: #{gcn_forward.1} parent=5 // pred_fallthru
        _
      %p221 = scmp.le.s32.totalorder 1, %s14
      %p222 = scmp.lt.s32.totalorder %s14, 3
      %p223 = pnand %p221, %p222
      %p224 = pneg %p223
      // Predicated region
      $region37: #{gcn_forward.1} parent=5 // pred_check
        _
      $region38: #{gcn_forward.1} parent=5 // pred_check_branch
        %226 = sbr.rel (%p223) target = $region40
      $region39: #{gcn_forward.1} parent=5 // pred_region
        %s227 = ssub.s32 %s14, 1
        %s228 = smul.u32 2, %s23
        %p229 = scmp.lt.s32.totalorder %s24, 1
        %s230 = scalar_select %p229, %s24, 1
        %p231 = scmp.lt.s32.totalorder %s228, 1
        %s232 = scalar_select %p231, %s228, 1
        %s233 = smul.addr %s230, 2
        %s234 = sadd.s32 %s232, %s233
        %s235 = smul.addr %s234, 8
        %s236 = scalar_lea.vmem %s0, %s235
        %p237 = pneg %p54
        %p238 = pneg %p51
        %s239 = smul.u32 2, %s23
        %p240 = scmp.lt.s32.totalorder %s239, 1
        %s241 = scalar_select %p240, %s239, 1
        %s242 = smul.addr %s241, 8
        %s243 = scalar_lea.vmem %s1, %s242
        %p244 = pneg %p80
        %p245 = pneg %p77
        %p246 = pneg %p101
        %p247 = pneg %p98
        %p248 = pneg %p122
        %p249 = pneg %p119
        %p250 = pneg %p143
        %p251 = pneg %p140
        %p252 = pneg %p171
        %p253 = pneg %p168
        %s254 = sand.u32 %s158, 1
        %s255 = scalar_lea.sflag [#allocation4], %s254
        %s256 = sand.u32 %s158, 1
        %s257 = smul.addr %s256, 16
        %s258 = scalar_lea.vmem [#allocation3], %s257
        %s259 = smul.u32 2, %s23
        %p260 = scmp.lt.s32.totalorder %s24, 1
        %s261 = scalar_select %p260, %s24, 1
        %p262 = scmp.lt.s32.totalorder %s259, 1
        %s263 = scalar_select %p262, %s259, 1
        %s264 = smul.addr %s261, 2
        %s265 = sadd.s32 %s263, %s264
        %s266 = smul.addr %s265, 8
        %s267 = scalar_lea.vmem %s0, %s266
        %s268 = smul.u32 2, %s23
        %s269 = smul.u32 2, %s23
        %p270 = scmp.lt.s32.totalorder %s269, 1
        %s271 = scalar_select %p270, %s269, 1
        %s272 = smul.addr %s271, 8
        %s273 = scalar_lea.vmem %s1, %s272
        %s274 = smul.u32 2, %s23
        %s275 = smul.u32 2, %s23
        %p276 = scmp.eq.s32.totalorder %s24, 0
        // Predicated region
        $region41: #{gcn_forward.1} parent=39 // pred_check
          %p277 = pneg %p276
        $region42: #{gcn_forward.1} parent=39 // pred_check_branch
          %279 = sbr.rel (%p277) target = $region44
        $region43: #{gcn_forward.1} parent=39 // pred_region
          %v280 = vld [vmem:[%s273] sm:$0xff]
          %v281 = vld [vmem:[%s273 + $0x8] sm:$0xff]
          %v282 = vld [vmem:[%s2] sm:$0xff]
          %v283 = vld [vmem:[%s2 + $0x8] sm:$0xff]
          %vm284 = vcmask 130048
          %v286 = vsel %vm284, %v280, 0
          %v289 = vsel %vm284, %v281, 0
          %291 = vmatprep.subr.mxu0 0.0
          %292 = vmatpush1.msra.mxu0 %v282
          %293 = vmatprep.subr.mxu0 0.0
          %294 = vmatpush1.msra.mxu0 %v283
          %295 = vmatprep.subr.mxu0 0.0
          %296 = vmatpush1.msra.mxu0 0.0
          %297 = vmatprep.subr.mxu0 0.0
          %298 = vmatpush1.msra.mxu0 0.0
          %299 = vmatprep.subr.mxu0 0.0
          %300 = vmatpush1.msra.mxu0 0.0
          %301 = vmatprep.subr.mxu0 0.0
          %302 = vmatpush1.msra.mxu0 0.0
          %303 = vmatprep.subr.mxu0 0.0
          %304 = vmatpush1.msra.mxu0 0.0
          %305 = vmatprep.subr.mxu0 0.0
          %306 = vmatpush1.msra.mxu0 0.0
          %307 = vmatprep.subr.mxu0 0.0
          %308 = vmatpush1.msra.mxu0 0.0
          %309 = vmatprep.subr.mxu0 0.0
          %310 = vmatpush1.msra.mxu0 0.0
          %311 = vmatprep.subr.mxu0 0.0
          %312 = vmatpush1.msra.mxu0 0.0
          %313 = vmatprep.subr.mxu0 0.0
          %314 = vmatpush1.msra.mxu0 0.0
          %315 = vmatprep.subr.mxu0 0.0
          %316 = vmatpush1.msra.mxu0 0.0
          %317 = vmatprep.subr.mxu0 0.0
          %318 = vmatpush1.msra.mxu0 0.0
          %319 = vmatprep.subr.mxu0 0.0
          %320 = vmatpush1.msra.mxu0 0.0
          %321 = vmatprep.subr.mxu0 0.0
          %322 = vmatpush1.msra.mxu0 0.0
          %323 = vmatprep.subr.mxu0 0.0
          %324 = vmatpush1.msra.mxu0 0.0
          %325 = vmatprep.subr.mxu0 0.0
          %326 = vmatpush1.msra.mxu0 0.0
          %327 = vmatprep.subr.mxu0 0.0
          %328 = vmatpush1.msra.mxu0 0.0
          %329 = vmatprep.subr.mxu0 0.0
          %330 = vmatpush1.msra.mxu0 0.0
          %331 = vmatprep.subr.mxu0 0.0
          %332 = vmatpush1.msra.mxu0 0.0
          %333 = vmatprep.subr.mxu0 0.0
          %334 = vmatpush1.msra.mxu0 0.0
          %335 = vmatprep.subr.mxu0 0.0
          %336 = vmatpush1.msra.mxu0 0.0
          %337 = vmatprep.subr.mxu0 0.0
          %338 = vmatpush1.msra.mxu0 0.0
          %339 = vmatprep.subr.mxu0 0.0
          %340 = vmatpush1.msra.mxu0 0.0
          %341 = vmatprep.subr.mxu0 0.0
          %342 = vmatpush1.msra.mxu0 0.0
          %343 = vmatprep.subr.mxu0 0.0
          %344 = vmatpush1.msra.mxu0 0.0
          %345 = vmatprep.subr.mxu0 0.0
          %346 = vmatpush1.msra.mxu0 0.0
          %347 = vmatprep.subr.mxu0 0.0
          %348 = vmatpush1.msra.mxu0 0.0
          %349 = vmatprep.subr.mxu0 0.0
          %350 = vmatpush1.msra.mxu0 0.0
          %351 = vmatprep.subr.mxu0 0.0
          %352 = vmatpush1.msra.mxu0 0.0
          %353 = vmatprep.subr.mxu0 0.0
          %354 = vmatpush1.msra.mxu0 0.0
          %355 = vmatprep.mubr.f32.mxu0 0.0
          %356 = vmatmul.mubr.f32.gmra.mrb[0].mxu0 %v286
          %v357 = vpop.f32.mrb[0].mxu0
          %v358 = vadd.f32 0.0, %v357
          %v359 = vpop.f32.mrb[0].mxu0
          %360 = vmatprep.mubr.f32.mxu0 0.0
          %361 = vmatmul.mubr.f32.gmra.mrb[0].mxu0 %v289
          %v362 = vpop.f32.mrb[0].mxu0
          %v363 = vadd.f32 0.0, %v362
          %v364 = vpop.f32.mrb[0].mxu0
          %365 = vdwg.mxu0
          %vm366 = vcmask 64512
          %367 = vst.msk [vmem:[#allocation2] sm:$0xff] %vm366, %v358
          %368 = vst.msk [vmem:[#allocation2 + $0x8] sm:$0xff] %vm366, %v363
        $region44: #{gcn_forward.1} parent=39 // pred_fallthru
          _
        %p369 = scmp.ne.s32.totalorder %s24, 0
        // Predicated region
        $region45: #{gcn_forward.1} parent=39 // pred_check
          %p370 = pneg %p369
        $region46: #{gcn_forward.1} parent=39 // pred_check_branch
          %372 = sbr.rel (%p370) target = $region48
        $region47: #{gcn_forward.1} parent=39 // pred_region
          %v373 = vld [vmem:[%s267] sm:$0xff]
          %v374 = vld [vmem:[%s267 + $0x8] sm:$0xff]
          %vm375 = vcmask 64512
          %376 = vst.msk [vmem:[#allocation2] sm:$0xff] %vm375, %v373
          %377 = vst.msk [vmem:[#allocation2 + $0x8] sm:$0xff] %vm375, %v374
        $region48: #{gcn_forward.1} parent=39 // pred_fallthru
          _
        %v378 = vld [vmem:[#allocation2] sm:$0xff]
        %v379 = vld [vmem:[#allocation2 + $0x8] sm:$0xff]
        %v380 = vld [vmem:[%s3] sm:$0xff]
        %v381 = vld [vmem:[%s4] sm:$0x1]
        %v383 = vlaneseq
        %v384 = vshrl.u32 %v383, 7
        %v385 = vsub.s32 0, %v384
        %v386 = vrot.slane %v381, %v385
        %vm388 = vcmask 64512
        %v390 = vsel %vm388, %v378, 0
        %v393 = vsel %vm388, %v379, 0
        %395 = vmatprep.subr.mxu0 0.0
        %396 = vmatpush1.msra.mxu0 %v380
        %397 = vmatprep.subr.mxu0 0.0
        %398 = vmatpush1.msra.mxu0 0.0
        %399 = vmatprep.subr.mxu0 0.0
        %400 = vmatpush1.msra.mxu0 0.0
        %401 = vmatprep.subr.mxu0 0.0
        %402 = vmatpush1.msra.mxu0 0.0
        %403 = vmatprep.subr.mxu0 0.0
        %404 = vmatpush1.msra.mxu0 0.0
        %405 = vmatprep.subr.mxu0 0.0
        %406 = vmatpush1.msra.mxu0 0.0
        %407 = vmatprep.subr.mxu0 0.0
        %408 = vmatpush1.msra.mxu0 0.0
        %409 = vmatprep.subr.mxu0 0.0
        %410 = vmatpush1.msra.mxu0 0.0
        %411 = vmatprep.subr.mxu0 0.0
        %412 = vmatpush1.msra.mxu0 0.0
        %413 = vmatprep.subr.mxu0 0.0
        %414 = vmatpush1.msra.mxu0 0.0
        %415 = vmatprep.subr.mxu0 0.0
        %416 = vmatpush1.msra.mxu0 0.0
        %417 = vmatprep.subr.mxu0 0.0
        %418 = vmatpush1.msra.mxu0 0.0
        %419 = vmatprep.subr.mxu0 0.0
        %420 = vmatpush1.msra.mxu0 0.0
        %421 = vmatprep.subr.mxu0 0.0
        %422 = vmatpush1.msra.mxu0 0.0
        %423 = vmatprep.subr.mxu0 0.0
        %424 = vmatpush1.msra.mxu0 0.0
        %425 = vmatprep.subr.mxu0 0.0
        %426 = vmatpush1.msra.mxu0 0.0
        %427 = vmatprep.subr.mxu0 0.0
        %428 = vmatpush1.msra.mxu0 0.0
        %429 = vmatprep.subr.mxu0 0.0
        %430 = vmatpush1.msra.mxu0 0.0
        %431 = vmatprep.subr.mxu0 0.0
        %432 = vmatpush1.msra.mxu0 0.0
        %433 = vmatprep.subr.mxu0 0.0
        %434 = vmatpush1.msra.mxu0 0.0
        %435 = vmatprep.subr.mxu0 0.0
        %436 = vmatpush1.msra.mxu0 0.0
        %437 = vmatprep.subr.mxu0 0.0
        %438 = vmatpush1.msra.mxu0 0.0
        %439 = vmatprep.subr.mxu0 0.0
        %440 = vmatpush1.msra.mxu0 0.0
        %441 = vmatprep.subr.mxu0 0.0
        %442 = vmatpush1.msra.mxu0 0.0
        %443 = vmatprep.subr.mxu0 0.0
        %444 = vmatpush1.msra.mxu0 0.0
        %445 = vmatprep.subr.mxu0 0.0
        %446 = vmatpush1.msra.mxu0 0.0
        %447 = vmatprep.subr.mxu0 0.0
        %448 = vmatpush1.msra.mxu0 0.0
        %449 = vmatprep.subr.mxu0 0.0
        %450 = vmatpush1.msra.mxu0 0.0
        %451 = vmatprep.subr.mxu0 0.0
        %452 = vmatpush1.msra.mxu0 0.0
        %453 = vmatprep.subr.mxu0 0.0
        %454 = vmatpush1.msra.mxu0 0.0
        %455 = vmatprep.subr.mxu0 0.0
        %456 = vmatpush1.msra.mxu0 0.0
        %457 = vmatprep.subr.mxu0 0.0
        %458 = vmatpush1.msra.mxu0 0.0
        %459 = vmatprep.mubr.f32.mxu0 0.0
        %460 = vmatmul.mubr.f32.gmra.mrb[0].mxu0 %v390
        %v461 = vpop.f32.mrb[0].mxu0
        %v462 = vadd.f32 %v386, %v461
        %v463 = vpop.f32.mrb[0].mxu0
        %464 = vmatprep.mubr.f32.mxu0 0.0
        %465 = vmatmul.mubr.f32.gmra.mrb[0].mxu0 %v393
        %v466 = vpop.f32.mrb[0].mxu0
        %v467 = vadd.f32 %v386, %v466
        %v468 = vpop.f32.mrb[0].mxu0
        %469 = vdwg.mxu0
        %vm470 = vcmask 261120
        %471 = vst.msk [vmem:[%s258] sm:$0xff] %vm470, %v462
        %472 = vst.msk [vmem:[%s258 + $0x8] sm:$0xff] %vm470, %v467
        %s473 = sand.u32 %s158, 1
        %s474 = scalar_lea.sflag [#allocation4], %s473
        %s475 = sand.u32 %s158, 1
        %s476 = smul.addr %s475, 16
        %s477 = scalar_lea.vmem [#allocation3], %s476
        // Predicated region
        $region49: #{gcn_forward.1} parent=39 // pred_check
          %p478 = pneg %p168
        $region50: #{gcn_forward.1} parent=39 // pred_check_branch
          %480 = sbr.rel (%p478) target = $region52
        $region51: #{gcn_forward.1} parent=39 // pred_region
          %s481 = smul.u32 2, %s23
          %s483 = ssub.s32 256, 256
          %484 = vsyncadd %s474, %s483
          %s485 = smul.addr %s24, 2
          %s486 = sadd.s32 %s481, %s485
          %s487 = smul.addr %s486, 128
          %s488 = scalar_lea.hbm %s5, %s487
          %s489 = sshll.u32 %s477, 4
          %s490 = int_to_ptr.vmem [resolvable:$true] %s489
          %495 = dma.vmem_to_hbm [thread:$0]  %s490, 256, %s488, %s474, 128, 128, 8
        $region52: #{gcn_forward.1} parent=39 // pred_fallthru
          _
      $region40: #{gcn_forward.1} parent=5 // pred_fallthru
        _
      %p496 = scmp.le.s32.totalorder 2, %s14
      // Predicated region
      $region53: #{gcn_forward.1} parent=5 // pred_check
        %p497 = pneg %p496
      $region54: #{gcn_forward.1} parent=5 // pred_check_branch
        %499 = sbr.rel (%p497) target = $region56
      $region55: #{gcn_forward.1} parent=5 // pred_region
        %s500 = ssub.s32 %s14, 2
        // Predicated region
        $region57: #{gcn_forward.1} parent=55 // pred_check
          %p501 = pneg %p174
        $region58: #{gcn_forward.1} parent=55 // pred_check_branch
          %503 = sbr.rel (%p501) target = $region60
        $region59: #{gcn_forward.1} parent=55 // pred_region
          %s504 = sand.u32 %s159, 1
          %s505 = scalar_lea.sflag [#allocation4], %s504
          %s506 = sand.u32 %s159, 1
          %s507 = smul.addr %s506, 16
          %s508 = scalar_lea.vmem [#allocation3], %s507
          %509 = dma.done %s505, 256
        $region60: #{gcn_forward.1} parent=55 // pred_fallthru
          _
      $region56: #{gcn_forward.1} parent=5 // pred_fallthru
        _
    $region6: #{gcn_forward.1} parent=1 // loop_footer
      %s18 = sadd.s32 1, %s14
    $region7: #{gcn_forward.1} parent=1 // loop_footer_branch
      %13 = sbr.rel target = $region3
    $region8: #{gcn_forward.1} parent=1 // loop_exit
      _
    %510 = vsyncpa [#allocation4], 1
    %s511 = scalar_lea.sflag [#allocation4], 1
    %512 = vsyncpa %s511, 1

</llo_original>
